<compile_context>
chip_gen: v7x
topology: tpu7x:2x2x1
jax: 0.10.0
libtpu: 0.0.40
codegen_flags: <defaults>
</compile_context>

<pallas_src>
import jax
import jax.numpy as jnp
from jax import lax
from jax.experimental import pallas as pl
from jax.experimental.pallas import tpu as pltpu

EPS = 1e-5  # PyTorch nn.LayerNorm default


def _round_up(x, m):
    return (x + m - 1) // m * m


def _sublane(dtype):
    # Native sublane packing per vreg: 8 for 4-byte, 16 for 2-byte, 32 for 1-byte.
    return max(8, 32 // jnp.dtype(dtype).itemsize)


def _vmem_budget_bytes():
    """Device VMEM capacity minus headroom for compiler-internal scratch."""
    try:
        cap = int(pltpu.get_tpu_info().vmem_capacity_bytes)
    except Exception:
        cap = 64 << 20  # conservative fallback (v7x-sized)
    return int(max(cap - (16 << 20), 32 << 20))


# ---------------------------------------------------------------------------
# Fused kernel: LayerNorm (affine folded into W/b) -> Linear
# ---------------------------------------------------------------------------
def prenorm_linear_kernel(x_ref, w_ref, b_ref, o_ref, y_ref):
    # LayerNorm once per row block: the column axis (grid axis 1) is the inner
    # "arbitrary" axis, so j == 0 always runs first for each row block.
    @pl.when(pl.program_id(1) == 0)
    def _():
        x = x_ref[...].astype(jnp.float32)                      # (bm, D)
        inv_d = 1.0 / x.shape[-1]
        mean = jnp.sum(x, axis=-1, keepdims=True) * inv_d       # one-pass stats
        ex2 = jnp.sum(x * x, axis=-1, keepdims=True) * inv_d
        var = jnp.maximum(ex2 - mean * mean, 0.0)
        y = (x - mean) * lax.rsqrt(var + EPS)
        y_ref[...] = y.astype(y_ref.dtype)                      # storage dtype

    # MXU matmul in the storage dtype (bf16 x bf16 -> f32 native on v6e/v7x).
    acc = jnp.dot(y_ref[...], w_ref[...], preferred_element_type=jnp.float32)
    o_ref[...] = (acc + b_ref[...].astype(jnp.float32)).astype(o_ref.dtype)


def pre_norm_linear(x, gamma, beta, w, b, *, block_rows=256, block_cols=512):
    """PreNorm(dim, nn.Linear(dim, H)).forward(x) == Linear(LayerNorm(x)).

    x: (B, S, D); gamma/beta: (D,); w: (D, H); b: (H,). Returns (B, S, H).
    """
    B, S, D = x.shape
    H = w.shape[1]
    N = B * S
    x2d = x.reshape(N, D)
    isz = jnp.dtype(x.dtype).itemsize
    sub = _sublane(x.dtype)

    # ---- fold the LayerNorm affine into the linear layer (f32, one-time) ----
    wf32 = w.astype(jnp.float32)
    w_f = gamma.astype(jnp.float32)[:, None] * wf32                 # (D, H)
    b_f = beta.astype(jnp.float32) @ wf32 + b.astype(jnp.float32)   # (H,)

    # ---- lane-dense output: pad H (weights/bias only) to a multiple of 128 --
    Hp = _round_up(H, 128)
    if Hp != H:
        w_f = jnp.pad(w_f, ((0, 0), (0, Hp - H)))
        b_f = jnp.pad(b_f, (0, Hp - H))
    w_f = w_f.astype(x.dtype)            # matmul runs in the storage dtype
    b2d = b_f.reshape(1, Hp)             # bias stays f32 (tiny)

    # ---- tile selection: fit the device VMEM budget, keep >=2 row blocks ----
    budget = _vmem_budget_bytes()
    bm = min(block_rows, _round_up(N, sub))
    if N > sub and pl.cdiv(N, bm) < 2:
        bm = _round_up(pl.cdiv(N, 2), sub)       # give both v7x cores work
    tn = min(block_cols, Hp)

    def footprint(bm_, tn_):
        return (2 * bm_ * D * isz            # x tile (double buffered)
                + bm_ * D * isz              # normalized-y VMEM scratch
                + 2 * D * tn_ * isz          # weight column tile
                + 2 * tn_ * 4                # bias tile (f32)
                + 2 * bm_ * tn_ * isz        # output tile
                + bm_ * D * 8 + bm_ * tn_ * 4)   # in-kernel f32 temporaries

    while footprint(bm, tn) > budget and tn > 128:
        tn = max(128, tn // 2)
    while footprint(bm, tn) > budget and bm > sub:
        new_bm = _round_up(max(bm // 2, sub), sub)
        if new_bm == bm:
            break
        bm = new_bm

    grid = (pl.cdiv(N, bm), pl.cdiv(Hp, tn))

    out2d = pl.pallas_call(
        prenorm_linear_kernel,
        out_shape=jax.ShapeDtypeStruct((N, Hp), x.dtype),
        grid_spec=pltpu.PrefetchScalarGridSpec(
            num_scalar_prefetch=0,
            grid=grid,
            in_specs=[
                pl.BlockSpec((bm, D), lambda i, j: (i, 0)),    # activations
                pl.BlockSpec((D, tn), lambda i, j: (0, j)),    # folded weights
                pl.BlockSpec((1, tn), lambda i, j: (0, j)),    # folded bias
            ],
            out_specs=pl.BlockSpec((bm, tn), lambda i, j: (i, j)),
            scratch_shapes=[pltpu.VMEM((bm, D), x.dtype)],     # normalized y
        ),
        compiler_params=pltpu.CompilerParams(
            # Column axis must stay "arbitrary": the y scratch is written at
            # j == 0 and reused across j, so j has to iterate in order per core.
            dimension_semantics=("parallel", "arbitrary"),
            vmem_limit_bytes=budget,
        ),
    )(x2d, w_f, b2d)

    if Hp != H:
        out2d = out2d[:, :H]
    return out2d.reshape(B, S, H)


# ---------------------------------------------------------------------------
# Standalone LayerNorm kernel (for a PreNorm wrapping an arbitrary `fn` that
# is not a single Linear and hence cannot be fused).
# ---------------------------------------------------------------------------
def layernorm_kernel(x_ref, g_ref, b_ref, o_ref):
    x = x_ref[...].astype(jnp.float32)
    inv_d = 1.0 / x.shape[-1]
    mean = jnp.sum(x, axis=-1, keepdims=True) * inv_d
    ex2 = jnp.sum(x * x, axis=-1, keepdims=True) * inv_d
    var = jnp.maximum(ex2 - mean * mean, 0.0)
    y = (x - mean) * lax.rsqrt(var + EPS)
    y = y * g_ref[...].astype(jnp.float32) + b_ref[...].astype(jnp.float32)
    o_ref[...] = y.astype(o_ref.dtype)


def layer_norm_2d(x2d, gamma, beta, *, block_rows=512):
    N, D = x2d.shape
    isz = jnp.dtype(x2d.dtype).itemsize
    sub = _sublane(x2d.dtype)
    budget = _vmem_budget_bytes()

    bm = min(block_rows, _round_up(N, sub))
    if N > sub and pl.cdiv(N, bm) < 2:
        bm = _round_up(pl.cdiv(N, 2), sub)

    def footprint(bm_):
        # in + out tiles (double buffered) + f32 temporaries + gamma/beta
        return 4 * bm_ * D * isz + bm_ * D * 8 + 4 * D * 4

    while footprint(bm) > budget and bm > sub:
        new_bm = _round_up(max(bm // 2, sub), sub)
        if new_bm == bm:
            break
        bm = new_bm

    return pl.pallas_call(
        layernorm_kernel,
        out_shape=jax.ShapeDtypeStruct((N, D), x2d.dtype),
        grid_spec=pltpu.PrefetchScalarGridSpec(
            num_scalar_prefetch=0,
            grid=(pl.cdiv(N, bm),),
            in_specs=[
                pl.BlockSpec((bm, D), lambda i: (i, 0)),
                pl.BlockSpec((1, D), lambda i: (0, 0)),
                pl.BlockSpec((1, D), lambda i: (0, 0)),
            ],
            out_specs=pl.BlockSpec((bm, D), lambda i: (i, 0)),
        ),
        compiler_params=pltpu.CompilerParams(
            dimension_semantics=("parallel",),
            vmem_limit_bytes=budget,
        ),
    )(x2d, gamma.reshape(1, D), beta.reshape(1, D))


def pre_norm(x, gamma, beta, fn, *, block_rows=512):
    """Generic PreNorm: fn(LayerNorm(x)).  LayerNorm in Pallas, fn in JAX."""
    B, S, D = x.shape
    y2d = layer_norm_2d(x.reshape(B * S, D), gamma, beta, block_rows=block_rows)
    out2d = fn(y2d)
    return out2d.reshape(B, S, out2d.shape[-1])


if __name__ == "__main__":
    key = jax.random.PRNGKey(0)
    kx, kg, kbeta, kw, kb, kx2, kw2, kb2 = jax.random.split(key, 8)

    def ln_ref(x, g, bt):
        mu = jnp.mean(x, axis=-1, keepdims=True)
        var = jnp.mean(jnp.square(x - mu), axis=-1, keepdims=True)
        return (x - mu) / jnp.sqrt(var + EPS) * g + bt

    # ---- fused path: PreNorm(dim, nn.Linear(dim, H)) ------------------------
    B, S, D, H = 2, 8, 32, 64
    x = jax.random.normal(kx, (B, S, D), dtype=jnp.float32)
    gamma = 1.0 + 0.1 * jax.random.normal(kg, (D,), dtype=jnp.float32)
    beta = 0.05 * jax.random.normal(kbeta, (D,), dtype=jnp.float32)
    w = jax.random.normal(kw, (D, H), dtype=jnp.float32) * 0.02
    b = jax.random.normal(kb, (H,), dtype=jnp.float32) * 0.02

    out = jax.block_until_ready(pre_norm_linear(x, gamma, beta, w, b))
    expected = ln_ref(x, gamma, beta) @ w + b
    assert out.shape == (B, S, H)
    assert jnp.allclose(out, expected, atol=1e-4, rtol=1e-4), \
        float(jnp.max(jnp.abs(out - expected)))

    # ---- generic path: arbitrary fn, ragged row count (partial block) -------
    B2, S2, D2, H2 = 2, 7, 32, 48
    x2 = jax.random.normal(kx2, (B2, S2, D2), dtype=jnp.float32)
    w2 = jax.random.normal(kw2, (D2, H2), dtype=jnp.float32) * 0.02
    b2 = jax.random.normal(kb2, (H2,), dtype=jnp.float32) * 0.02
    fn = lambda y: jnp.tanh(y @ w2 + b2)

    out2 = jax.block_until_ready(pre_norm(x2, gamma, beta, fn))
    expected2 = fn(ln_ref(x2, gamma, beta))
    assert out2.shape == (B2, S2, H2)
    assert jnp.allclose(out2, expected2, atol=1e-4, rtol=1e-4), \
        float(jnp.max(jnp.abs(out2 - expected2)))

    print("KERNEL_OK")
</pallas_src>

<mosaic_0001>
module attributes {stable_mosaic.version = 11 : i64} {
  func.func @prenorm_linear_kernel(%arg0: i32, %arg1: i32, %arg2: memref<8x32xf32, #tpu.memory_space<vmem>>, %arg3: memref<32x128xf32, #tpu.memory_space<vmem>>, %arg4: memref<1x128xf32, #tpu.memory_space<vmem>>, %arg5: memref<8x128xf32, #tpu.memory_space<vmem>>, %arg6: memref<8x32xf32, #tpu.memory_space<vmem>>) attributes {dimension_semantics = [#tpu.dimension_semantics<parallel>, #tpu.dimension_semantics<arbitrary>], iteration_bounds = array<i64: 2, 1>, scalar_prefetch = 0 : i64, scratch_operands = 1 : i64, tpu.core_type = #tpu.core_type<tc>, window_params = [{transform_indices = @transform_0, window_bounds = array<i64: 8, 32>}, {transform_indices = @transform_1, window_bounds = array<i64: 32, 128>}, {transform_indices = @transform_2, window_bounds = array<i64: 1, 128>}, {transform_indices = @transform_3, window_bounds = array<i64: 8, 128>}]} {
    %c0_i32 = arith.constant 0 : i32
    %0 = arith.cmpi eq, %arg1, %c0_i32 : i32
    %1 = arith.extui %0 : i1 to i32
    %c0_i32_0 = arith.constant 0 : i32
    %2 = arith.cmpi ne, %1, %c0_i32_0 : i32
    scf.if %2 {
      %c0_8 = arith.constant 0 : index
      %c0_9 = arith.constant 0 : index
      %10 = vector.load %arg2[%c0_8, %c0_9] : memref<8x32xf32, #tpu.memory_space<vmem>>, vector<8x32xf32>
      %cst_10 = arith.constant dense<0.000000e+00> : vector<8xf32>
      %11 = vector.multi_reduction <add>, %10, %cst_10 [1] : vector<8x32xf32> to vector<8xf32>
      %12 = vector.shape_cast %11 : vector<8xf32> to vector<8x1xf32>
      %cst_11 = arith.constant 3.125000e-02 : f32
      %13 = vector.broadcast %cst_11 : f32 to vector<8x1xf32>
      %14 = arith.mulf %12, %13 : vector<8x1xf32>
      %15 = arith.mulf %10, %10 : vector<8x32xf32>
      %cst_12 = arith.constant dense<0.000000e+00> : vector<8xf32>
      %16 = vector.multi_reduction <add>, %15, %cst_12 [1] : vector<8x32xf32> to vector<8xf32>
      %17 = vector.shape_cast %16 : vector<8xf32> to vector<8x1xf32>
      %cst_13 = arith.constant 3.125000e-02 : f32
      %18 = vector.broadcast %cst_13 : f32 to vector<8x1xf32>
      %19 = arith.mulf %17, %18 : vector<8x1xf32>
      %20 = arith.mulf %14, %14 : vector<8x1xf32>
      %21 = arith.subf %19, %20 : vector<8x1xf32>
      %cst_14 = arith.constant 0.000000e+00 : f32
      %22 = vector.broadcast %cst_14 : f32 to vector<8x1xf32>
      %23 = arith.maximumf %21, %22 : vector<8x1xf32>
      %24 = vector.broadcast %14 : vector<8x1xf32> to vector<8x32xf32>
      %25 = arith.subf %10, %24 : vector<8x32xf32>
      %cst_15 = arith.constant 9.99999974E-6 : f32
      %26 = vector.broadcast %cst_15 : f32 to vector<8x1xf32>
      %27 = arith.addf %23, %26 : vector<8x1xf32>
      %28 = math.rsqrt %27 : vector<8x1xf32>
      %29 = vector.broadcast %28 : vector<8x1xf32> to vector<8x32xf32>
      %30 = arith.mulf %25, %29 : vector<8x32xf32>
      %c0_16 = arith.constant 0 : index
      %c0_17 = arith.constant 0 : index
      %31 = vector.load %arg6[%c0_16, %c0_17] : memref<8x32xf32, #tpu.memory_space<vmem>>, vector<8x32xf32>
      tpu.vector_store %arg6[%c0_16, %c0_17], %30 {strides = array<i32>} : memref<8x32xf32, #tpu.memory_space<vmem>>, vector<8x32xf32>,
    } else {
    }
    %c0 = arith.constant 0 : index
    %c0_1 = arith.constant 0 : index
    %3 = vector.load %arg6[%c0, %c0_1] : memref<8x32xf32, #tpu.memory_space<vmem>>, vector<8x32xf32>
    %c0_2 = arith.constant 0 : index
    %c0_3 = arith.constant 0 : index
    %4 = vector.load %arg3[%c0_2, %c0_3] : memref<32x128xf32, #tpu.memory_space<vmem>>, vector<32x128xf32>
    %cst = arith.constant dense<0.000000e+00> : vector<8x128xf32>
    %5 = tpu.matmul %3, %4, %cst {dimension_numbers = #tpu.dot_dimension_numbers<[1], [0], [0], [1], [0, 0, 1, 1], [], []>} : vector<8x32xf32>, vector<32x128xf32>, vector<8x128xf32> -> vector<8x128xf32>
    %c0_4 = arith.constant 0 : index
    %c0_5 = arith.constant 0 : index
    %6 = vector.load %arg4[%c0_4, %c0_5] : memref<1x128xf32, #tpu.memory_space<vmem>>, vector<1x128xf32>
    %7 = vector.broadcast %6 : vector<1x128xf32> to vector<8x128xf32>
    %8 = arith.addf %5, %7 : vector<8x128xf32>
    %c0_6 = arith.constant 0 : index
    %c0_7 = arith.constant 0 : index
    %9 = vector.load %arg5[%c0_6, %c0_7] : memref<8x128xf32, #tpu.memory_space<vmem>>, vector<8x128xf32>
    tpu.vector_store %arg5[%c0_6, %c0_7], %8 {strides = array<i32>} : memref<8x128xf32, #tpu.memory_space<vmem>>, vector<8x128xf32>,
    return
  }
  func.func @transform_0(%arg0: i32, %arg1: i32) -> (i32, i32) {
    %c0_i32 = arith.constant 0 : i32
    %c0_i32_0 = arith.constant 0 : i32
    return %arg0, %c0_i32 : i32, i32
  }
  func.func @transform_1(%arg0: i32, %arg1: i32) -> (i32, i32) {
    %c0_i32 = arith.constant 0 : i32
    %c0_i32_0 = arith.constant 0 : i32
    return %c0_i32, %arg1 : i32, i32
  }
  func.func @transform_2(%arg0: i32, %arg1: i32) -> (i32, i32) {
    %c0_i32 = arith.constant 0 : i32
    %c0_i32_0 = arith.constant 0 : i32
    return %c0_i32, %arg1 : i32, i32
  }
  func.func @transform_3(%arg0: i32, %arg1: i32) -> (i32, i32) {
    %c0_i32 = arith.constant 0 : i32
    return %arg0, %arg1 : i32, i32
  }
}

</mosaic_0001>

<llo_original>
// kernel: tpu_custom_call.1
$region0: #{tpu_custom_call.1}
  #allocation0 [shape = 'u32[]', space=smem, size = 0x4, offset = 0x4, fixed_abs, tag = 'smem constant byte address 0x4 - core index']
  #allocation1 [shape = 'u32[144,128]{1,0:T(1,128)}', space=vmem, size = 0x12000, scoped, tag = 'internal scratch']
  #allocation2 [shape = 'f32[8,32]{1,0:T(8,128)}', space=vmem, size = 0x1000, scoped, tag = 'scratch operand']
  %s0 = inlined_call_operand.hbm [shape: f32[16,32], index: 0, kind: input, shape index: {}]
  %s1 = inlined_call_operand.hbm [shape: f32[32,128], index: 1, kind: input, shape index: {}]
  %s2 = inlined_call_operand.vmem [shape: f32[1,128], index: 2, kind: input, shape index: {}]
  %s3 = inlined_call_operand.hbm [shape: f32[16,128], index: 3, kind: output, shape index: {}]
  %s4 = sld [smem:[#allocation0]]
  $region57: #{tpu_custom_call.1} parent=0
    _
  %s6 = ssub.s32 1, %s4
  %s7 = scalar_select 0, %s6, %s4
  $region1: #{tpu_custom_call.1} parent=0
    #allocation3 [shape = 'u8[8192]{0}', space=vmem, size = 0x2000, scoped, tag = 'input window, operand 0']
    #allocation4 [shape = 's32[2]{0}', space=sflag, size = 0x8, scoped, tag = 'scoped memory for tpu_custom_call.1']
    #allocation5 [shape = 's32[2]{0}', space=sflag, size = 0x8, scoped, tag = 'scoped memory for tpu_custom_call.1']
    #allocation6 [shape = 'u8[16384]{0}', space=vmem, size = 0x4000, scoped, tag = 'input window, operand 1, single buffered']
    #allocation7 [shape = 's32[1]{0}', space=sflag, size = 0x4, scoped, tag = 'scoped memory for tpu_custom_call.1']
    #allocation8 [shape = 'u8[8192]{0}', space=vmem, size = 0x2000, scoped, tag = 'output window, operand 0']
    %8 = vsyncpa [#allocation4], 0
    %s9 = scalar_lea.sflag [#allocation4], 1
    %10 = vsyncpa %s9, 0
    %11 = vsyncpa [#allocation7], 0
    %12 = vsyncpa [#allocation5], 0
    %s13 = scalar_lea.sflag [#allocation5], 1
    %14 = vsyncpa %s13, 0
    loop: start=0, step=1, limit=4
    $region2: #{tpu_custom_call.1} parent=1 // loop_pre_header
      _
    $region3: #{tpu_custom_call.1} parent=1 // loop_header
      %s16 = sphi 0, %s20
      %p17 = scmp.ge.s32.totalorder %s16, 4
      %s23 = sphi 0, %s35
      %s24 = sphi 0, %s31
      %s25 = sphi 0, %s23
      %s26 = sphi 0, %s24
      %s27 = sphi 0, %s25
      %s28 = sphi 0, %s26
      %s38 = sphi 0, %s40
      %s41 = sphi 0, %s38
      %s42 = sphi 0, %s41
      %s58 = sphi 0, %s42
      %s64 = sphi 0, %s66
      %s67 = sphi 0, %s64
      %s68 = sphi 0, %s67
      %s84 = sphi 0, %s68
      %s90 = sphi 0, %s92
      %s93 = sphi 0, %s90
      %s94 = sphi 0, %s93
      %s110 = sphi 0, %s94
      %s118 = sphi 0, %s120
      %s121 = sphi 0, %s118
      %s122 = sphi 0, %s121
      %s138 = sphi 0, %s122
    $region4: #{tpu_custom_call.1} parent=1 // loop_header_branch
      %19 = sbr.rel (%p17) target = $region8
    $region5: #{tpu_custom_call.1} parent=1 // loop_body
      %s21 = ssub.s32 %s16, 1
      %s22 = ssub.s32 %s16, 2
      %s29 = sadd.s32 1, %s24
      %p30 = scmp.ge.s32.totalorder %s29, 1
      %s31 = scalar_select %p30, 0, %s29
      %s32 = sadd.s32 1, %s23
      %s33 = scalar_select %p30, %s32, %s23
      %p34 = scmp.ge.s32.totalorder %s33, 2
      %s35 = scalar_select %p34, 0, %s33
      %s36 = ssub.s32 %s23, %s35
      %p37 = scmp.eq.s32.totalorder %s36, 0
      %s39 = sadd.s32 %s38, 1
      %s40 = scalar_select %p37, %s38, %s39
      %p43 = pneg %p37
      %p44 = scmp.eq.s32.totalorder %s16, 1
      %p45 = por %p43, %p44
      %p46 = scmp.ne.s32.totalorder %s38, %s41
      %p47 = scmp.eq.s32.totalorder %s16, 0
      %p48 = por %p46, %p47
      %p49 = scmp.ne.s32.totalorder %s38, %s41
      %p50 = scmp.eq.s32.totalorder %s21, 1
      %p51 = por %p49, %p50
      %p52 = scmp.ne.s32.totalorder %s41, %s42
      %p53 = scmp.eq.s32.totalorder %s21, 0
      %p54 = por %p52, %p53
      %p55 = scmp.ne.s32.totalorder %s41, %s42
      %p56 = scmp.eq.s32.totalorder %s22, 1
      %p57 = por %p55, %p56
      %p59 = scmp.ne.s32.totalorder %s42, %s58
      %p60 = scmp.eq.s32.totalorder %s22, 0
      %p61 = por %p59, %p60
      %s62 = ssub.s32 %s24, %s31
      %p63 = scmp.eq.s32.totalorder %s62, 0
      %s65 = sadd.s32 %s64, 1
      %s66 = scalar_select %p63, %s64, %s65
      %p69 = pneg %p63
      %p70 = scmp.eq.s32.totalorder %s16, 1
      %p71 = por %p69, %p70
      %p72 = scmp.ne.s32.totalorder %s64, %s67
      %p73 = scmp.eq.s32.totalorder %s16, 0
      %p74 = por %p72, %p73
      %p75 = scmp.ne.s32.totalorder %s64, %s67
      %p76 = scmp.eq.s32.totalorder %s21, 1
      %p77 = por %p75, %p76
      %p78 = scmp.ne.s32.totalorder %s67, %s68
      %p79 = scmp.eq.s32.totalorder %s21, 0
      %p80 = por %p78, %p79
      %p81 = scmp.ne.s32.totalorder %s67, %s68
      %p82 = scmp.eq.s32.totalorder %s22, 1
      %p83 = por %p81, %p82
      %p85 = scmp.ne.s32.totalorder %s68, %s84
      %p86 = scmp.eq.s32.totalorder %s22, 0
      %p87 = por %p85, %p86
      %s88 = ssub.s32 %s24, %s31
      %p89 = scmp.eq.s32.totalorder %s88, 0
      %s91 = sadd.s32 %s90, 1
      %s92 = scalar_select %p89, %s90, %s91
      %p95 = pneg %p89
      %p96 = scmp.eq.s32.totalorder %s16, 1
      %p97 = por %p95, %p96
      %p98 = scmp.ne.s32.totalorder %s90, %s93
      %p99 = scmp.eq.s32.totalorder %s16, 0
      %p100 = por %p98, %p99
      %p101 = scmp.ne.s32.totalorder %s90, %s93
      %p102 = scmp.eq.s32.totalorder %s21, 1
      %p103 = por %p101, %p102
      %p104 = scmp.ne.s32.totalorder %s93, %s94
      %p105 = scmp.eq.s32.totalorder %s21, 0
      %p106 = por %p104, %p105
      %p107 = scmp.ne.s32.totalorder %s93, %s94
      %p108 = scmp.eq.s32.totalorder %s22, 1
      %p109 = por %p107, %p108
      %p111 = scmp.ne.s32.totalorder %s94, %s110
      %p112 = scmp.eq.s32.totalorder %s22, 0
      %p113 = por %p111, %p112
      %s114 = ssub.s32 %s23, %s35
      %s115 = ssub.s32 %s24, %s31
      %s116 = sor.u32 %s114, %s115
      %p117 = scmp.eq.s32.totalorder %s116, 0
      %s119 = sadd.s32 %s118, 1
      %s120 = scalar_select %p117, %s118, %s119
      %p123 = pneg %p117
      %p124 = scmp.eq.s32.totalorder %s16, 1
      %p125 = por %p123, %p124
      %p126 = scmp.ne.s32.totalorder %s118, %s121
      %p127 = scmp.eq.s32.totalorder %s16, 0
      %p128 = por %p126, %p127
      %p129 = scmp.ne.s32.totalorder %s118, %s121
      %p130 = scmp.eq.s32.totalorder %s21, 1
      %p131 = por %p129, %p130
      %p132 = scmp.ne.s32.totalorder %s121, %s122
      %p133 = scmp.eq.s32.totalorder %s21, 0
      %p134 = por %p132, %p133
      %p135 = scmp.ne.s32.totalorder %s121, %s122
      %p136 = scmp.eq.s32.totalorder %s22, 1
      %p137 = por %p135, %p136
      %p139 = scmp.ne.s32.totalorder %s122, %s138
      %p140 = scmp.eq.s32.totalorder %s22, 0
      %p141 = por %p139, %p140
      %p142 = scmp.le.s32.totalorder 1, %s16
      %p143 = scmp.lt.s32.totalorder %s16, 3
      %p144 = pnand %p142, %p143
      %p145 = pneg %p144
      // Predicated region
      $region9: #{tpu_custom_call.1} parent=5 // pred_check
        _
      $region10: #{tpu_custom_call.1} parent=5 // pred_check_branch
        %147 = sbr.rel (%p144) target = $region12
      $region11: #{tpu_custom_call.1} parent=5 // pred_region
        %s148 = ssub.s32 %s16, 1
        // Predicated region
        $region13: #{tpu_custom_call.1} parent=11 // pred_check
          %p149 = pneg %p80
        $region14: #{tpu_custom_call.1} parent=11 // pred_check_branch
          %151 = sbr.rel (%p149) target = $region16
        $region15: #{tpu_custom_call.1} parent=11 // pred_region
          %s153 = ssub.s32 512, 512
          %154 = vsyncadd [#allocation7], %s153
          %s155 = smul.addr %s26, 128
          %s156 = scalar_lea.hbm %s1, %s155
          %s157 = sshll.u32 [#allocation6], 4
          %s158 = int_to_ptr.vmem [resolvable:$true] %s157
          %163 = dma.hbm_to_vmem [thread:$0]  %s156, 512, %s158, [#allocation7], 128, 128, 8
        $region16: #{tpu_custom_call.1} parent=11 // pred_fallthru
          _
        // Predicated region
        $region17: #{tpu_custom_call.1} parent=11 // pred_check
          %p164 = pneg %p106
        $region18: #{tpu_custom_call.1} parent=11 // pred_check_branch
          %166 = sbr.rel (%p164) target = $region20
        $region19: #{tpu_custom_call.1} parent=11 // pred_region
          %p167 = scmp.lt.s32.totalorder %s26, 0
          %s168 = scalar_select %p167, %s26, 0
          %s169 = scalar_lea.vmem %s2, %s168
        $region20: #{tpu_custom_call.1} parent=11 // pred_fallthru
          _
      $region12: #{tpu_custom_call.1} parent=5 // pred_fallthru
        _
      %p170 = scmp.lt.s32.totalorder %s16, 2
      // Predicated region
      $region21: #{tpu_custom_call.1} parent=5 // pred_check
        %p171 = pneg %p170
      $region22: #{tpu_custom_call.1} parent=5 // pred_check_branch
        %173 = sbr.rel (%p171) target = $region24
      $region23: #{tpu_custom_call.1} parent=5 // pred_region
        // Predicated region
        $region25: #{tpu_custom_call.1} parent=23 // pred_check
          %p174 = pneg %p48
        $region26: #{tpu_custom_call.1} parent=23 // pred_check_branch
          %176 = sbr.rel (%p174) target = $region28
        $region27: #{tpu_custom_call.1} parent=23 // pred_region
          %s177 = sand.u32 %s38, 1
          %s178 = scalar_lea.sflag [#allocation4], %s177
          %s179 = sand.u32 %s38, 1
          %s180 = smul.addr %s179, 8
          %s181 = scalar_lea.vmem [#allocation3], %s180
          %s183 = ssub.s32 128, 128
          %184 = vsyncadd %s178, %s183
          %s185 = smul.addr %s23, 128
          %s186 = scalar_lea.hbm %s0, %s185
          %s188 = sshll.u32 %s181, 4
          %s189 = int_to_ptr.vmem [resolvable:$true] %s188
          %191 = dma.hbm_to_vmem [thread:$0]  %s186, 128, %s189, %s178
        $region28: #{tpu_custom_call.1} parent=23 // pred_fallthru
          _
      $region24: #{tpu_custom_call.1} parent=5 // pred_fallthru
        _
      %p192 = scmp.le.s32.totalorder 1, %s16
      %p193 = scmp.lt.s32.totalorder %s16, 3
      %p194 = pnand %p192, %p193
      %p195 = pneg %p194
      // Predicated region
      $region29: #{tpu_custom_call.1} parent=5 // pred_check
        _
      $region30: #{tpu_custom_call.1} parent=5 // pred_check_branch
        %197 = sbr.rel (%p194) target = $region32
      $region31: #{tpu_custom_call.1} parent=5 // pred_region
        %s198 = ssub.s32 %s16, 1
        %s199 = sand.u32 %s41, 1
        %s200 = scalar_lea.sflag [#allocation4], %s199
        %s201 = sand.u32 %s41, 1
        %s202 = smul.addr %s201, 8
        %s203 = scalar_lea.vmem [#allocation3], %s202
        // Predicated region
        $region33: #{tpu_custom_call.1} parent=31 // pred_check
          %p204 = pneg %p54
        $region34: #{tpu_custom_call.1} parent=31 // pred_check_branch
          %206 = sbr.rel (%p204) target = $region36
        $region35: #{tpu_custom_call.1} parent=31 // pred_region
          %207 = dma.done %s200, 128
        $region36: #{tpu_custom_call.1} parent=31 // pred_fallthru
          _
        // Predicated region
        $region37: #{tpu_custom_call.1} parent=31 // pred_check
          %p208 = pneg %p80
        $region38: #{tpu_custom_call.1} parent=31 // pred_check_branch
          %210 = sbr.rel (%p208) target = $region40
        $region39: #{tpu_custom_call.1} parent=31 // pred_region
          %211 = dma.done [#allocation7], 512
        $region40: #{tpu_custom_call.1} parent=31 // pred_fallthru
          _
        %s212 = sand.u32 %s41, 1
        %s213 = scalar_lea.sflag [#allocation4], %s212
        %s214 = sand.u32 %s41, 1
        %s215 = smul.addr %s214, 8
        %s216 = scalar_lea.vmem [#allocation3], %s215
        %p217 = pneg %p54
        %p218 = pneg %p51
        %p219 = pneg %p80
        %p220 = pneg %p77
        %p221 = scmp.lt.s32.totalorder %s26, 0
        %s222 = scalar_select %p221, %s26, 0
        %s223 = scalar_lea.vmem %s2, %s222
        %p224 = pneg %p106
        %p225 = pneg %p103
        %p226 = pneg %p134
        %p227 = pneg %p131
        %s228 = sand.u32 %s121, 1
        %s229 = scalar_lea.sflag [#allocation5], %s228
        %s230 = sand.u32 %s121, 1
        %s231 = smul.addr %s230, 8
        %s232 = scalar_lea.vmem [#allocation8], %s231
        %p233 = scmp.lt.s32.totalorder %s26, 0
        %s234 = scalar_select %p233, %s26, 0
        %s235 = scalar_lea.vmem %s2, %s234
        %p236 = scmp.eq.s32.totalorder %s26, 0
        // Predicated region
        $region41: #{tpu_custom_call.1} parent=31 // pred_check
          %p237 = pneg %p236
        $region42: #{tpu_custom_call.1} parent=31 // pred_check_branch
          %239 = sbr.rel (%p237) target = $region44
        $region43: #{tpu_custom_call.1} parent=31 // pred_region
          %v240 = vld [vmem:[%s203] sm:$0xff]
          %vm241 = vcmask 261120
          %v242 = vsel %vm241, %v240, 0.0
          %243 = vadd.xlane.f32.xlu0 %v242
          %v244 = vpop.xlane.xlu0 %243
          %v245 = vmul.f32 %v244, 0.03125
          %v246 = vmul.f32 %v240, %v240
          %v247 = vsel %vm241, %v246, 0.0
          %248 = vadd.xlane.f32.xlu0 %v247
          %v249 = vpop.xlane.xlu0 %248
          %v250 = vmul.f32 %v249, 0.03125
          %v251 = vmul.f32 %v245, %v245
          %v252 = vsub.f32 %v250, %v251
          %v253 = vmax.f32 %v252, 0.0
          %v254 = vsub.f32 %v240, %v245
          %v255 = vadd.f32 %v253, 1e-05
          %v256 = vrsqrt.pop %v255
          %v257 = vmul.f32 %v254, %v256
          %258 = vst.msk [vmem:[#allocation2] sm:$0xff] %vm241, %v257
        $region44: #{tpu_custom_call.1} parent=31 // pred_fallthru
          _
        %v259 = vld [vmem:[#allocation2] sm:$0xff]
        %v260 = vld [vmem:[#allocation6] sm:$0xff]
        %v261 = vld [vmem:[#allocation6 + $0x8] sm:$0xff]
        %v262 = vld [vmem:[#allocation6 + $0x10] sm:$0xff]
        %v263 = vld [vmem:[#allocation6 + $0x18] sm:$0xff]
        %v264 = vld [vmem:[%s235] sm:$0x1]
        %v266 = vlaneseq
        %v267 = vshrl.u32 %v266, 7
        %v268 = vsub.s32 0, %v267
        %v269 = vrot.slane %v264, %v268
        %vm271 = vcmask 261120
        %v273 = vsel %vm271, %v259, 0
        %275 = vmatprep.subr.mxu0 0.0
        %276 = vmatpush1.msra.mxu0 %v260
        %277 = vmatprep.subr.mxu0 0.0
        %278 = vmatpush1.msra.mxu0 %v261
        %279 = vmatprep.subr.mxu0 0.0
        %280 = vmatpush1.msra.mxu0 %v262
        %281 = vmatprep.subr.mxu0 0.0
        %282 = vmatpush1.msra.mxu0 %v263
        %283 = vmatprep.subr.mxu0 0.0
        %284 = vmatpush1.msra.mxu0 0.0
        %285 = vmatprep.subr.mxu0 0.0
        %286 = vmatpush1.msra.mxu0 0.0
        %287 = vmatprep.subr.mxu0 0.0
        %288 = vmatpush1.msra.mxu0 0.0
        %289 = vmatprep.subr.mxu0 0.0
        %290 = vmatpush1.msra.mxu0 0.0
        %291 = vmatprep.subr.mxu0 0.0
        %292 = vmatpush1.msra.mxu0 0.0
        %293 = vmatprep.subr.mxu0 0.0
        %294 = vmatpush1.msra.mxu0 0.0
        %295 = vmatprep.subr.mxu0 0.0
        %296 = vmatpush1.msra.mxu0 0.0
        %297 = vmatprep.subr.mxu0 0.0
        %298 = vmatpush1.msra.mxu0 0.0
        %299 = vmatprep.subr.mxu0 0.0
        %300 = vmatpush1.msra.mxu0 0.0
        %301 = vmatprep.subr.mxu0 0.0
        %302 = vmatpush1.msra.mxu0 0.0
        %303 = vmatprep.subr.mxu0 0.0
        %304 = vmatpush1.msra.mxu0 0.0
        %305 = vmatprep.subr.mxu0 0.0
        %306 = vmatpush1.msra.mxu0 0.0
        %307 = vmatprep.subr.mxu0 0.0
        %308 = vmatpush1.msra.mxu0 0.0
        %309 = vmatprep.subr.mxu0 0.0
        %310 = vmatpush1.msra.mxu0 0.0
        %311 = vmatprep.subr.mxu0 0.0
        %312 = vmatpush1.msra.mxu0 0.0
        %313 = vmatprep.subr.mxu0 0.0
        %314 = vmatpush1.msra.mxu0 0.0
        %315 = vmatprep.subr.mxu0 0.0
        %316 = vmatpush1.msra.mxu0 0.0
        %317 = vmatprep.subr.mxu0 0.0
        %318 = vmatpush1.msra.mxu0 0.0
        %319 = vmatprep.subr.mxu0 0.0
        %320 = vmatpush1.msra.mxu0 0.0
        %321 = vmatprep.subr.mxu0 0.0
        %322 = vmatpush1.msra.mxu0 0.0
        %323 = vmatprep.subr.mxu0 0.0
        %324 = vmatpush1.msra.mxu0 0.0
        %325 = vmatprep.subr.mxu0 0.0
        %326 = vmatpush1.msra.mxu0 0.0
        %327 = vmatprep.subr.mxu0 0.0
        %328 = vmatpush1.msra.mxu0 0.0
        %329 = vmatprep.subr.mxu0 0.0
        %330 = vmatpush1.msra.mxu0 0.0
        %331 = vmatprep.subr.mxu0 0.0
        %332 = vmatpush1.msra.mxu0 0.0
        %333 = vmatprep.subr.mxu0 0.0
        %334 = vmatpush1.msra.mxu0 0.0
        %335 = vmatprep.subr.mxu0 0.0
        %336 = vmatpush1.msra.mxu0 0.0
        %337 = vmatprep.subr.mxu0 0.0
        %338 = vmatpush1.msra.mxu0 0.0
        %339 = vmatprep.mubr.f32.mxu0 0.0
        %340 = vmatmul.mubr.f32.gmra.mrb[0].mxu0 %v273
        %v341 = vpop.f32.mrb[0].mxu0
        %v342 = vadd.f32 %v269, %v341
        %v343 = vpop.f32.mrb[0].mxu0
        %344 = vdwg.mxu0
        %345 = vst [vmem:[%s232] sm:$0xff] %v342
        %s346 = sand.u32 %s121, 1
        %s347 = scalar_lea.sflag [#allocation5], %s346
        %s348 = sand.u32 %s121, 1
        %s349 = smul.addr %s348, 8
        %s350 = scalar_lea.vmem [#allocation8], %s349
        // Predicated region
        $region45: #{tpu_custom_call.1} parent=31 // pred_check
          %p351 = pneg %p131
        $region46: #{tpu_custom_call.1} parent=31 // pred_check_branch
          %353 = sbr.rel (%p351) target = $region48
        $region47: #{tpu_custom_call.1} parent=31 // pred_region
          %s355 = ssub.s32 128, 128
          %356 = vsyncadd %s347, %s355
          %s357 = sadd.s32 %s26, %s25
          %s358 = smul.addr %s357, 128
          %s359 = scalar_lea.hbm %s3, %s358
          %s361 = sshll.u32 %s350, 4
          %s362 = int_to_ptr.vmem [resolvable:$true] %s361
          %364 = dma.vmem_to_hbm [thread:$0]  %s362, 128, %s359, %s347
        $region48: #{tpu_custom_call.1} parent=31 // pred_fallthru
          _
      $region32: #{tpu_custom_call.1} parent=5 // pred_fallthru
        _
      %p365 = scmp.le.s32.totalorder 2, %s16
      // Predicated region
      $region49: #{tpu_custom_call.1} parent=5 // pred_check
        %p366 = pneg %p365
      $region50: #{tpu_custom_call.1} parent=5 // pred_check_branch
        %368 = sbr.rel (%p366) target = $region52
      $region51: #{tpu_custom_call.1} parent=5 // pred_region
        %s369 = ssub.s32 %s16, 2
        // Predicated region
        $region53: #{tpu_custom_call.1} parent=51 // pred_check
          %p370 = pneg %p137
        $region54: #{tpu_custom_call.1} parent=51 // pred_check_branch
          %372 = sbr.rel (%p370) target = $region56
        $region55: #{tpu_custom_call.1} parent=51 // pred_region
          %s373 = sand.u32 %s122, 1
          %s374 = scalar_lea.sflag [#allocation5], %s373
          %s375 = sand.u32 %s122, 1
          %s376 = smul.addr %s375, 8
          %s377 = scalar_lea.vmem [#allocation8], %s376
          %378 = dma.done %s374, 128
        $region56: #{tpu_custom_call.1} parent=51 // pred_fallthru
          _
      $region52: #{tpu_custom_call.1} parent=5 // pred_fallthru
        _
    $region6: #{tpu_custom_call.1} parent=1 // loop_footer
      %s20 = sadd.s32 1, %s16
    $region7: #{tpu_custom_call.1} parent=1 // loop_footer_branch
      %15 = sbr.rel target = $region3
    $region8: #{tpu_custom_call.1} parent=1 // loop_exit
      _
    %379 = vsyncpa [#allocation4], 1
    %s380 = scalar_lea.sflag [#allocation4], 1
    %381 = vsyncpa %s380, 1
    %382 = vsyncpa [#allocation7], 1
    %383 = vsyncpa [#allocation5], 1
    %s384 = scalar_lea.sflag [#allocation5], 1
    %385 = vsyncpa %s384, 1

</llo_original>
